<compile_context>
chip_gen: v5e
topology: v5e:2x2
jax: 0.10.0
libtpu: 0.0.40
codegen_flags: <defaults>
</compile_context>

<pallas_src>
import functools

import jax
import jax.numpy as jnp
from jax import lax
from jax.experimental import pallas as pl
from jax.experimental.pallas import tpu as pltpu

NEG_SLOPE = 0.01  # nn.LeakyReLU default


def _leaky_relu(x):
    return jnp.where(x > 0, x, NEG_SLOPE * x)


def _round_up(x, m):
    return ((x + m - 1) // m) * m


def _default_compute_dtype():
    """bf16 elementwise math on chips with a bf16 VPU (v6e/v7x); f32 on v5e."""
    try:
        kind = jax.devices()[0].device_kind.lower()
    except Exception:
        return jnp.float32
    if any(tag in kind for tag in ("v6", "v7", "tpu7")):
        return jnp.bfloat16
    return jnp.float32


def _choose_batch_tile(B, batch_tile):
    """Pick the per-step batch tile (the lane dimension inside the kernel)."""
    if B < 256:
        # Small batch: one exact block (block shape == array shape), no edge
        # handling needed at all.
        return B
    # Large batch: lane-aligned tile (multiple of 128 so feature-major output
    # stores stay unmasked), capped so the parallel grid has >= 2 steps
    # (v7x megacore sharding; elsewhere it just enables DMA/compute overlap).
    bt = _round_up(pl.cdiv(B, 2), 128)
    bt = min(bt, _round_up(batch_tile, 128))
    return max(bt, 128)


def resfc_kernel(n_blocks, compute_dtype, x_ref, eye_ref, *refs):
    """Fused ResFc forward, feature-major internals.

    x_ref:   (bt, D)   natural batch-major activation tile
    eye_ref: (D, D)    identity in the compute dtype (used for the MXU flip)
    refs = [w1_0, b1_0, w2_0, b2_0, ..., w_head, b_head, out_ref]
      w*: (out, in) bf16 (PyTorch layout, LHS of every dot)
      b*: (out, 1)  compute dtype (head bias: f32), lane-broadcast columns
    out_ref: (out_dim, bt)  feature-major output tile (batch on lanes)
    """
    o_ref = refs[-1]
    params = refs[:-1]

    # ---- Layout flip on the MXU (replaces the old wrapper-side x.T / pad). --
    # Contract x's last (feature) dim against an identity LHS: the NT dot
    # pattern ('qd,kd->qk').  Result is the feature-major residual stream
    # (D, bt) with the batch dimension on the 128-lane axis; exact values.
    x_bm = x_ref[...].astype(eye_ref.dtype)
    h = lax.dot_general(
        eye_ref[...], x_bm,
        dimension_numbers=(((1,), (1,)), ((), ())),
        preferred_element_type=jnp.float32,
    ).astype(compute_dtype)                      # (D, bt)

    for i in range(n_blocks):
        w1, b1, w2, b2 = params[4 * i: 4 * i + 4]
        y = jnp.dot(w1[...], h.astype(jnp.bfloat16),
                    preferred_element_type=jnp.float32).astype(compute_dtype)
        y = _leaky_relu(y + b1[...])
        y = jnp.dot(w2[...], y.astype(jnp.bfloat16),
                    preferred_element_type=jnp.float32).astype(compute_dtype)
        y = _leaky_relu(y + b2[...])
        h = h + y                                 # residual add (lane-dense)

    # Head: plain Linear (no activation); bias added on the f32 accumulation.
    # TODO(synk): if a bundle dump shows the vmatmul-push slot binding, this
    # tiny (16, D) matmul can be moved onto otherwise-slack VALU slots.
    wh, bh = params[-2], params[-1]
    o_ref[...] = (jnp.dot(wh[...], h.astype(jnp.bfloat16),
                          preferred_element_type=jnp.float32)
                  + bh[...]).astype(o_ref.dtype)


def resfc_forward(x, block_params, head_params, *,
                  batch_tile=2048, compute_dtype=None):
    """ResFc forward.  x: (B, D) float32 in natural batch-major layout.

    block_params: list of (w1, b1, w2, b2) in PyTorch layout (w: (out, in),
    b: (out,)).  head_params: (wh, bh) likewise.  Returns (B, out_dim) f32.

    compute_dtype: dtype of the residual stream / elementwise math inside the
    kernel (MXU inputs are always bf16, accumulation always f32).  Defaults to
    bf16 on v6e/v7x (bf16 VPU path) and f32 on v5e / unknown devices.
    """
    B, D = x.shape
    n_blocks = len(block_params)
    out_dim = head_params[0].shape[0]

    if compute_dtype is None:
        compute_dtype = _default_compute_dtype()
    cdt = jnp.dtype(compute_dtype)

    bt = _choose_batch_tile(B, batch_tile)
    grid = (pl.cdiv(B, bt),)

    # Identity used for the in-kernel batch-major -> feature-major flip.
    eye = jnp.eye(D, dtype=cdt)

    # Weights as bf16 (native MXU operand mode, halves param DMA).  Block
    # biases as (out, 1) lane-broadcast columns in the compute dtype; the head
    # bias stays f32 (added on the f32 accumulation).
    flat_params = []
    for (w1, b1, w2, b2) in block_params:
        flat_params += [w1.astype(jnp.bfloat16), b1.reshape(-1, 1).astype(cdt),
                        w2.astype(jnp.bfloat16), b2.reshape(-1, 1).astype(cdt)]
    wh, bh = head_params
    flat_params += [wh.astype(jnp.bfloat16),
                    bh.reshape(-1, 1).astype(jnp.float32)]

    x_spec = pl.BlockSpec((bt, D), lambda i: (i, 0))
    eye_spec = pl.BlockSpec((D, D), lambda i: (0, 0))
    # Constant block index -> parameters stay VMEM-resident across grid steps;
    # only the x tile and the output tile are streamed (default Buffered(2)).
    param_specs = [pl.BlockSpec(p.shape, lambda i: (0, 0)) for p in flat_params]
    # Feature-major output (out_dim, B): batch on the lane axis -> every
    # kernel-side store is lane-dense (out_dim=16 would otherwise produce
    # 16-wide masked vst).  The single cheap (out_dim, B) -> (B, out_dim)
    # transpose of this smallest tensor is left to XLA outside the kernel.
    out_spec = pl.BlockSpec((out_dim, bt), lambda i: (0, i))

    kernel = functools.partial(resfc_kernel, n_blocks, cdt)

    out_fm = pl.pallas_call(
        kernel,
        out_shape=jax.ShapeDtypeStruct((out_dim, B), jnp.float32),
        grid_spec=pltpu.PrefetchScalarGridSpec(
            num_scalar_prefetch=0,
            grid=grid,
            in_specs=[x_spec, eye_spec] + param_specs,
            out_specs=out_spec,
        ),
        compiler_params=pltpu.CompilerParams(
            dimension_semantics=("parallel",),
        ),
    )(x, eye, *flat_params)

    return out_fm.T.astype(x.dtype)


# ---------------------------------------------------------------------------
# Deterministic parameter init (mirrors nn.Linear's U(-1/sqrt(fan_in), ...)).
# Weights are kept in PyTorch (out, in) layout.
# ---------------------------------------------------------------------------
def init_linear(key, in_features, out_features):
    kw, kb = jax.random.split(key)
    bound = float(in_features) ** -0.5
    w = jax.random.uniform(kw, (out_features, in_features), jnp.float32,
                           -bound, bound)
    b = jax.random.uniform(kb, (out_features,), jnp.float32, -bound, bound)
    return w, b


def init_resfc(key, input_plane, output_plane, expansions):
    block_params = []
    for e in expansions:
        key, k1, k2 = jax.random.split(key, 3)
        w1, b1 = init_linear(k1, input_plane, input_plane * e)
        w2, b2 = init_linear(k2, input_plane * e, input_plane)
        block_params.append((w1, b1, w2, b2))
    key, kh = jax.random.split(key)
    head_params = init_linear(kh, input_plane, output_plane)
    return block_params, head_params


# Pure-JAX f32 reference for correctness checking.
def resfc_reference(x, block_params, head_params):
    h = x.astype(jnp.float32)
    for (w1, b1, w2, b2) in block_params:
        y = _leaky_relu(h @ w1.T + b1)
        y = _leaky_relu(y @ w2.T + b2)
        h = h + y
    wh, bh = head_params
    return (h @ wh.T + bh).astype(x.dtype)


if __name__ == "__main__":
    input_plane = 32
    output_plane = 16
    expansions = [2, 2, 2, 2]

    root = jax.random.PRNGKey(0)
    k_params, k_x, k_x2 = jax.random.split(root, 3)

    block_params, head_params = init_resfc(
        k_params, input_plane, output_plane, expansions)

    # Small batch: single exact block (tile == batch), f32 elementwise math.
    x = jax.random.normal(k_x, (8, input_plane), jnp.float32)
    out = jax.block_until_ready(
        resfc_forward(x, block_params, head_params,
                      compute_dtype=jnp.float32))
    ref = resfc_reference(x, block_params, head_params)
    assert out.shape == (8, output_plane)
    assert jnp.allclose(out, ref, atol=5e-2, rtol=5e-2), \
        "mismatch vs reference (small, f32 compute)"

    # Ragged batch: 2-step parallel grid with a partial (masked) last tile and
    # the device-default compute dtype (bf16 on v6e/v7x, f32 on v5e).
    x2 = jax.random.normal(k_x2, (300, input_plane), jnp.float32)
    out2 = jax.block_until_ready(
        resfc_forward(x2, block_params, head_params))
    ref2 = resfc_reference(x2, block_params, head_params)
    assert out2.shape == (300, output_plane)
    assert jnp.allclose(out2, ref2, atol=1e-1, rtol=1e-1), \
        "mismatch vs reference (ragged, default compute dtype)"

    print("KERNEL_OK")
</pallas_src>

<mosaic_0001>
module attributes {stable_mosaic.version = 11 : i64} {
  func.func @resfc_kernel(%arg0: i32, %arg1: memref<8x32xf32, #tpu.memory_space<vmem>>, %arg2: memref<32x32xf32, #tpu.memory_space<vmem>>, %arg3: memref<64x32xbf16, #tpu.memory_space<vmem>>, %arg4: memref<64x1xf32, #tpu.memory_space<vmem>>, %arg5: memref<32x64xbf16, #tpu.memory_space<vmem>>, %arg6: memref<32x1xf32, #tpu.memory_space<vmem>>, %arg7: memref<64x32xbf16, #tpu.memory_space<vmem>>, %arg8: memref<64x1xf32, #tpu.memory_space<vmem>>, %arg9: memref<32x64xbf16, #tpu.memory_space<vmem>>, %arg10: memref<32x1xf32, #tpu.memory_space<vmem>>, %arg11: memref<64x32xbf16, #tpu.memory_space<vmem>>, %arg12: memref<64x1xf32, #tpu.memory_space<vmem>>, %arg13: memref<32x64xbf16, #tpu.memory_space<vmem>>, %arg14: memref<32x1xf32, #tpu.memory_space<vmem>>, %arg15: memref<64x32xbf16, #tpu.memory_space<vmem>>, %arg16: memref<64x1xf32, #tpu.memory_space<vmem>>, %arg17: memref<32x64xbf16, #tpu.memory_space<vmem>>, %arg18: memref<32x1xf32, #tpu.memory_space<vmem>>, %arg19: memref<16x32xbf16, #tpu.memory_space<vmem>>, %arg20: memref<16x1xf32, #tpu.memory_space<vmem>>, %arg21: memref<16x8xf32, #tpu.memory_space<vmem>>) attributes {dimension_semantics = [#tpu.dimension_semantics<parallel>], iteration_bounds = array<i64: 1>, scalar_prefetch = 0 : i64, scratch_operands = 0 : i64, tpu.core_type = #tpu.core_type<tc>, window_params = [{transform_indices = @transform_0, window_bounds = array<i64: 8, 32>}, {pipeline_mode = #tpu.pipeline_mode<synchronous>, transform_indices = @transform_1, window_bounds = array<i64: 32, 32>}, {pipeline_mode = #tpu.pipeline_mode<synchronous>, transform_indices = @transform_2, window_bounds = array<i64: 64, 32>}, {pipeline_mode = #tpu.pipeline_mode<synchronous>, transform_indices = @transform_3, window_bounds = array<i64: 64, 1>}, {pipeline_mode = #tpu.pipeline_mode<synchronous>, transform_indices = @transform_4, window_bounds = array<i64: 32, 64>}, {pipeline_mode = #tpu.pipeline_mode<synchronous>, transform_indices = @transform_5, window_bounds = array<i64: 32, 1>}, {pipeline_mode = #tpu.pipeline_mode<synchronous>, transform_indices = @transform_6, window_bounds = array<i64: 64, 32>}, {pipeline_mode = #tpu.pipeline_mode<synchronous>, transform_indices = @transform_7, window_bounds = array<i64: 64, 1>}, {pipeline_mode = #tpu.pipeline_mode<synchronous>, transform_indices = @transform_8, window_bounds = array<i64: 32, 64>}, {pipeline_mode = #tpu.pipeline_mode<synchronous>, transform_indices = @transform_9, window_bounds = array<i64: 32, 1>}, {pipeline_mode = #tpu.pipeline_mode<synchronous>, transform_indices = @transform_10, window_bounds = array<i64: 64, 32>}, {pipeline_mode = #tpu.pipeline_mode<synchronous>, transform_indices = @transform_11, window_bounds = array<i64: 64, 1>}, {pipeline_mode = #tpu.pipeline_mode<synchronous>, transform_indices = @transform_12, window_bounds = array<i64: 32, 64>}, {pipeline_mode = #tpu.pipeline_mode<synchronous>, transform_indices = @transform_13, window_bounds = array<i64: 32, 1>}, {pipeline_mode = #tpu.pipeline_mode<synchronous>, transform_indices = @transform_14, window_bounds = array<i64: 64, 32>}, {pipeline_mode = #tpu.pipeline_mode<synchronous>, transform_indices = @transform_15, window_bounds = array<i64: 64, 1>}, {pipeline_mode = #tpu.pipeline_mode<synchronous>, transform_indices = @transform_16, window_bounds = array<i64: 32, 64>}, {pipeline_mode = #tpu.pipeline_mode<synchronous>, transform_indices = @transform_17, window_bounds = array<i64: 32, 1>}, {pipeline_mode = #tpu.pipeline_mode<synchronous>, transform_indices = @transform_18, window_bounds = array<i64: 16, 32>}, {pipeline_mode = #tpu.pipeline_mode<synchronous>, transform_indices = @transform_19, window_bounds = array<i64: 16, 1>}, {transform_indices = @transform_20, window_bounds = array<i64: 16, 8>}]} {
    %c0 = arith.constant 0 : index
    %c0_0 = arith.constant 0 : index
    %0 = vector.load %arg1[%c0, %c0_0] : memref<8x32xf32, #tpu.memory_space<vmem>>, vector<8x32xf32>
    %c0_1 = arith.constant 0 : index
    %c0_2 = arith.constant 0 : index
    %1 = vector.load %arg2[%c0_1, %c0_2] : memref<32x32xf32, #tpu.memory_space<vmem>>, vector<32x32xf32>
    %cst = arith.constant dense<0.000000e+00> : vector<32x8xf32>
    %2 = tpu.matmul %1, %0, %cst {dimension_numbers = #tpu.dot_dimension_numbers<[1], [1], [0], [0], [0, 0, 1, 0], [], []>} : vector<32x32xf32>, vector<8x32xf32>, vector<32x8xf32> -> vector<32x8xf32>
    %c0_3 = arith.constant 0 : index
    %c0_4 = arith.constant 0 : index
    %3 = vector.load %arg3[%c0_3, %c0_4] : memref<64x32xbf16, #tpu.memory_space<vmem>>, vector<64x32xbf16>
    %4 = arith.truncf %2 : vector<32x8xf32> to vector<32x8xbf16>
    %cst_5 = arith.constant dense<0.000000e+00> : vector<64x8xf32>
    %5 = tpu.matmul %3, %4, %cst_5 {dimension_numbers = #tpu.dot_dimension_numbers<[1], [0], [0], [1], [0, 0, 1, 1], [], []>} : vector<64x32xbf16>, vector<32x8xbf16>, vector<64x8xf32> -> vector<64x8xf32>
    %c0_6 = arith.constant 0 : index
    %c0_7 = arith.constant 0 : index
    %6 = vector.load %arg4[%c0_6, %c0_7] : memref<64x1xf32, #tpu.memory_space<vmem>>, vector<64x1xf32>
    %7 = vector.broadcast %6 : vector<64x1xf32> to vector<64x8xf32>
    %8 = arith.addf %5, %7 : vector<64x8xf32>
    %cst_8 = arith.constant 0.000000e+00 : f32
    %9 = vector.broadcast %cst_8 : f32 to vector<64x8xf32>
    %10 = arith.cmpf ogt, %8, %9 : vector<64x8xf32>
    %cst_9 = arith.constant 0.00999999977 : f32
    %11 = vector.broadcast %cst_9 : f32 to vector<64x8xf32>
    %12 = arith.mulf %11, %8 : vector<64x8xf32>
    %13 = arith.select %10, %8, %12 : vector<64x8xi1>, vector<64x8xf32>
    %c0_10 = arith.constant 0 : index
    %c0_11 = arith.constant 0 : index
    %14 = vector.load %arg5[%c0_10, %c0_11] : memref<32x64xbf16, #tpu.memory_space<vmem>>, vector<32x64xbf16>
    %15 = arith.truncf %13 : vector<64x8xf32> to vector<64x8xbf16>
    %cst_12 = arith.constant dense<0.000000e+00> : vector<32x8xf32>
    %16 = tpu.matmul %14, %15, %cst_12 {dimension_numbers = #tpu.dot_dimension_numbers<[1], [0], [0], [1], [0, 0, 1, 1], [], []>} : vector<32x64xbf16>, vector<64x8xbf16>, vector<32x8xf32> -> vector<32x8xf32>
    %c0_13 = arith.constant 0 : index
    %c0_14 = arith.constant 0 : index
    %17 = vector.load %arg6[%c0_13, %c0_14] : memref<32x1xf32, #tpu.memory_space<vmem>>, vector<32x1xf32>
    %18 = vector.broadcast %17 : vector<32x1xf32> to vector<32x8xf32>
    %19 = arith.addf %16, %18 : vector<32x8xf32>
    %cst_15 = arith.constant 0.000000e+00 : f32
    %20 = vector.broadcast %cst_15 : f32 to vector<32x8xf32>
    %21 = arith.cmpf ogt, %19, %20 : vector<32x8xf32>
    %cst_16 = arith.constant 0.00999999977 : f32
    %22 = vector.broadcast %cst_16 : f32 to vector<32x8xf32>
    %23 = arith.mulf %22, %19 : vector<32x8xf32>
    %24 = arith.select %21, %19, %23 : vector<32x8xi1>, vector<32x8xf32>
    %25 = arith.addf %2, %24 : vector<32x8xf32>
    %c0_17 = arith.constant 0 : index
    %c0_18 = arith.constant 0 : index
    %26 = vector.load %arg7[%c0_17, %c0_18] : memref<64x32xbf16, #tpu.memory_space<vmem>>, vector<64x32xbf16>
    %27 = arith.truncf %25 : vector<32x8xf32> to vector<32x8xbf16>
    %cst_19 = arith.constant dense<0.000000e+00> : vector<64x8xf32>
    %28 = tpu.matmul %26, %27, %cst_19 {dimension_numbers = #tpu.dot_dimension_numbers<[1], [0], [0], [1], [0, 0, 1, 1], [], []>} : vector<64x32xbf16>, vector<32x8xbf16>, vector<64x8xf32> -> vector<64x8xf32>
    %c0_20 = arith.constant 0 : index
    %c0_21 = arith.constant 0 : index
    %29 = vector.load %arg8[%c0_20, %c0_21] : memref<64x1xf32, #tpu.memory_space<vmem>>, vector<64x1xf32>
    %30 = vector.broadcast %29 : vector<64x1xf32> to vector<64x8xf32>
    %31 = arith.addf %28, %30 : vector<64x8xf32>
    %cst_22 = arith.constant 0.000000e+00 : f32
    %32 = vector.broadcast %cst_22 : f32 to vector<64x8xf32>
    %33 = arith.cmpf ogt, %31, %32 : vector<64x8xf32>
    %cst_23 = arith.constant 0.00999999977 : f32
    %34 = vector.broadcast %cst_23 : f32 to vector<64x8xf32>
    %35 = arith.mulf %34, %31 : vector<64x8xf32>
    %36 = arith.select %33, %31, %35 : vector<64x8xi1>, vector<64x8xf32>
    %c0_24 = arith.constant 0 : index
    %c0_25 = arith.constant 0 : index
    %37 = vector.load %arg9[%c0_24, %c0_25] : memref<32x64xbf16, #tpu.memory_space<vmem>>, vector<32x64xbf16>
    %38 = arith.truncf %36 : vector<64x8xf32> to vector<64x8xbf16>
    %cst_26 = arith.constant dense<0.000000e+00> : vector<32x8xf32>
    %39 = tpu.matmul %37, %38, %cst_26 {dimension_numbers = #tpu.dot_dimension_numbers<[1], [0], [0], [1], [0, 0, 1, 1], [], []>} : vector<32x64xbf16>, vector<64x8xbf16>, vector<32x8xf32> -> vector<32x8xf32>
    %c0_27 = arith.constant 0 : index
    %c0_28 = arith.constant 0 : index
    %40 = vector.load %arg10[%c0_27, %c0_28] : memref<32x1xf32, #tpu.memory_space<vmem>>, vector<32x1xf32>
    %41 = vector.broadcast %40 : vector<32x1xf32> to vector<32x8xf32>
    %42 = arith.addf %39, %41 : vector<32x8xf32>
    %cst_29 = arith.constant 0.000000e+00 : f32
    %43 = vector.broadcast %cst_29 : f32 to vector<32x8xf32>
    %44 = arith.cmpf ogt, %42, %43 : vector<32x8xf32>
    %cst_30 = arith.constant 0.00999999977 : f32
    %45 = vector.broadcast %cst_30 : f32 to vector<32x8xf32>
    %46 = arith.mulf %45, %42 : vector<32x8xf32>
    %47 = arith.select %44, %42, %46 : vector<32x8xi1>, vector<32x8xf32>
    %48 = arith.addf %25, %47 : vector<32x8xf32>
    %c0_31 = arith.constant 0 : index
    %c0_32 = arith.constant 0 : index
    %49 = vector.load %arg11[%c0_31, %c0_32] : memref<64x32xbf16, #tpu.memory_space<vmem>>, vector<64x32xbf16>
    %50 = arith.truncf %48 : vector<32x8xf32> to vector<32x8xbf16>
    %cst_33 = arith.constant dense<0.000000e+00> : vector<64x8xf32>
    %51 = tpu.matmul %49, %50, %cst_33 {dimension_numbers = #tpu.dot_dimension_numbers<[1], [0], [0], [1], [0, 0, 1, 1], [], []>} : vector<64x32xbf16>, vector<32x8xbf16>, vector<64x8xf32> -> vector<64x8xf32>
    %c0_34 = arith.constant 0 : index
    %c0_35 = arith.constant 0 : index
    %52 = vector.load %arg12[%c0_34, %c0_35] : memref<64x1xf32, #tpu.memory_space<vmem>>, vector<64x1xf32>
    %53 = vector.broadcast %52 : vector<64x1xf32> to vector<64x8xf32>
    %54 = arith.addf %51, %53 : vector<64x8xf32>
    %cst_36 = arith.constant 0.000000e+00 : f32
    %55 = vector.broadcast %cst_36 : f32 to vector<64x8xf32>
    %56 = arith.cmpf ogt, %54, %55 : vector<64x8xf32>
    %cst_37 = arith.constant 0.00999999977 : f32
    %57 = vector.broadcast %cst_37 : f32 to vector<64x8xf32>
    %58 = arith.mulf %57, %54 : vector<64x8xf32>
    %59 = arith.select %56, %54, %58 : vector<64x8xi1>, vector<64x8xf32>
    %c0_38 = arith.constant 0 : index
    %c0_39 = arith.constant 0 : index
    %60 = vector.load %arg13[%c0_38, %c0_39] : memref<32x64xbf16, #tpu.memory_space<vmem>>, vector<32x64xbf16>
    %61 = arith.truncf %59 : vector<64x8xf32> to vector<64x8xbf16>
    %cst_40 = arith.constant dense<0.000000e+00> : vector<32x8xf32>
    %62 = tpu.matmul %60, %61, %cst_40 {dimension_numbers = #tpu.dot_dimension_numbers<[1], [0], [0], [1], [0, 0, 1, 1], [], []>} : vector<32x64xbf16>, vector<64x8xbf16>, vector<32x8xf32> -> vector<32x8xf32>
    %c0_41 = arith.constant 0 : index
    %c0_42 = arith.constant 0 : index
    %63 = vector.load %arg14[%c0_41, %c0_42] : memref<32x1xf32, #tpu.memory_space<vmem>>, vector<32x1xf32>
    %64 = vector.broadcast %63 : vector<32x1xf32> to vector<32x8xf32>
    %65 = arith.addf %62, %64 : vector<32x8xf32>
    %cst_43 = arith.constant 0.000000e+00 : f32
    %66 = vector.broadcast %cst_43 : f32 to vector<32x8xf32>
    %67 = arith.cmpf ogt, %65, %66 : vector<32x8xf32>
    %cst_44 = arith.constant 0.00999999977 : f32
    %68 = vector.broadcast %cst_44 : f32 to vector<32x8xf32>
    %69 = arith.mulf %68, %65 : vector<32x8xf32>
    %70 = arith.select %67, %65, %69 : vector<32x8xi1>, vector<32x8xf32>
    %71 = arith.addf %48, %70 : vector<32x8xf32>
    %c0_45 = arith.constant 0 : index
    %c0_46 = arith.constant 0 : index
    %72 = vector.load %arg15[%c0_45, %c0_46] : memref<64x32xbf16, #tpu.memory_space<vmem>>, vector<64x32xbf16>
    %73 = arith.truncf %71 : vector<32x8xf32> to vector<32x8xbf16>
    %cst_47 = arith.constant dense<0.000000e+00> : vector<64x8xf32>
    %74 = tpu.matmul %72, %73, %cst_47 {dimension_numbers = #tpu.dot_dimension_numbers<[1], [0], [0], [1], [0, 0, 1, 1], [], []>} : vector<64x32xbf16>, vector<32x8xbf16>, vector<64x8xf32> -> vector<64x8xf32>
    %c0_48 = arith.constant 0 : index
    %c0_49 = arith.constant 0 : index
    %75 = vector.load %arg16[%c0_48, %c0_49] : memref<64x1xf32, #tpu.memory_space<vmem>>, vector<64x1xf32>
    %76 = vector.broadcast %75 : vector<64x1xf32> to vector<64x8xf32>
    %77 = arith.addf %74, %76 : vector<64x8xf32>
    %cst_50 = arith.constant 0.000000e+00 : f32
    %78 = vector.broadcast %cst_50 : f32 to vector<64x8xf32>
    %79 = arith.cmpf ogt, %77, %78 : vector<64x8xf32>
    %cst_51 = arith.constant 0.00999999977 : f32
    %80 = vector.broadcast %cst_51 : f32 to vector<64x8xf32>
    %81 = arith.mulf %80, %77 : vector<64x8xf32>
    %82 = arith.select %79, %77, %81 : vector<64x8xi1>, vector<64x8xf32>
    %c0_52 = arith.constant 0 : index
    %c0_53 = arith.constant 0 : index
    %83 = vector.load %arg17[%c0_52, %c0_53] : memref<32x64xbf16, #tpu.memory_space<vmem>>, vector<32x64xbf16>
    %84 = arith.truncf %82 : vector<64x8xf32> to vector<64x8xbf16>
    %cst_54 = arith.constant dense<0.000000e+00> : vector<32x8xf32>
    %85 = tpu.matmul %83, %84, %cst_54 {dimension_numbers = #tpu.dot_dimension_numbers<[1], [0], [0], [1], [0, 0, 1, 1], [], []>} : vector<32x64xbf16>, vector<64x8xbf16>, vector<32x8xf32> -> vector<32x8xf32>
    %c0_55 = arith.constant 0 : index
    %c0_56 = arith.constant 0 : index
    %86 = vector.load %arg18[%c0_55, %c0_56] : memref<32x1xf32, #tpu.memory_space<vmem>>, vector<32x1xf32>
    %87 = vector.broadcast %86 : vector<32x1xf32> to vector<32x8xf32>
    %88 = arith.addf %85, %87 : vector<32x8xf32>
    %cst_57 = arith.constant 0.000000e+00 : f32
    %89 = vector.broadcast %cst_57 : f32 to vector<32x8xf32>
    %90 = arith.cmpf ogt, %88, %89 : vector<32x8xf32>
    %cst_58 = arith.constant 0.00999999977 : f32
    %91 = vector.broadcast %cst_58 : f32 to vector<32x8xf32>
    %92 = arith.mulf %91, %88 : vector<32x8xf32>
    %93 = arith.select %90, %88, %92 : vector<32x8xi1>, vector<32x8xf32>
    %94 = arith.addf %71, %93 : vector<32x8xf32>
    %c0_59 = arith.constant 0 : index
    %c0_60 = arith.constant 0 : index
    %95 = vector.load %arg19[%c0_59, %c0_60] : memref<16x32xbf16, #tpu.memory_space<vmem>>, vector<16x32xbf16>
    %96 = arith.truncf %94 : vector<32x8xf32> to vector<32x8xbf16>
    %cst_61 = arith.constant dense<0.000000e+00> : vector<16x8xf32>
    %97 = tpu.matmul %95, %96, %cst_61 {dimension_numbers = #tpu.dot_dimension_numbers<[1], [0], [0], [1], [0, 0, 1, 1], [], []>} : vector<16x32xbf16>, vector<32x8xbf16>, vector<16x8xf32> -> vector<16x8xf32>
    %c0_62 = arith.constant 0 : index
    %c0_63 = arith.constant 0 : index
    %98 = vector.load %arg20[%c0_62, %c0_63] : memref<16x1xf32, #tpu.memory_space<vmem>>, vector<16x1xf32>
    %99 = vector.broadcast %98 : vector<16x1xf32> to vector<16x8xf32>
    %100 = arith.addf %97, %99 : vector<16x8xf32>
    %c0_64 = arith.constant 0 : index
    %c0_65 = arith.constant 0 : index
    %101 = vector.load %arg21[%c0_64, %c0_65] : memref<16x8xf32, #tpu.memory_space<vmem>>, vector<16x8xf32>
    tpu.vector_store %arg21[%c0_64, %c0_65], %100 {strides = array<i32>} : memref<16x8xf32, #tpu.memory_space<vmem>>, vector<16x8xf32>,
    return
  }
  func.func @transform_0(%arg0: i32) -> (i32, i32) {
    %c0_i32 = arith.constant 0 : i32
    %c0_i32_0 = arith.constant 0 : i32
    return %arg0, %c0_i32 : i32, i32
  }
  func.func @transform_1(%arg0: i32) -> (i32, i32) {
    %c0_i32 = arith.constant 0 : i32
    %c0_i32_0 = arith.constant 0 : i32
    %c0_i32_1 = arith.constant 0 : i32
    return %c0_i32, %c0_i32_0 : i32, i32
  }
  func.func @transform_2(%arg0: i32) -> (i32, i32) {
    %c0_i32 = arith.constant 0 : i32
    %c0_i32_0 = arith.constant 0 : i32
    %c0_i32_1 = arith.constant 0 : i32
    return %c0_i32, %c0_i32_0 : i32, i32
  }
  func.func @transform_3(%arg0: i32) -> (i32, i32) {
    %c0_i32 = arith.constant 0 : i32
    %c0_i32_0 = arith.constant 0 : i32
    %c0_i32_1 = arith.constant 0 : i32
    return %c0_i32, %c0_i32_0 : i32, i32
  }
  func.func @transform_4(%arg0: i32) -> (i32, i32) {
    %c0_i32 = arith.constant 0 : i32
    %c0_i32_0 = arith.constant 0 : i32
    %c0_i32_1 = arith.constant 0 : i32
    return %c0_i32, %c0_i32_0 : i32, i32
  }
  func.func @transform_5(%arg0: i32) -> (i32, i32) {
    %c0_i32 = arith.constant 0 : i32
    %c0_i32_0 = arith.constant 0 : i32
    %c0_i32_1 = arith.constant 0 : i32
    return %c0_i32, %c0_i32_0 : i32, i32
  }
  func.func @transform_6(%arg0: i32) -> (i32, i32) {
    %c0_i32 = arith.constant 0 : i32
    %c0_i32_0 = arith.constant 0 : i32
    %c0_i32_1 = arith.constant 0 : i32
    return %c0_i32, %c0_i32_0 : i32, i32
  }
  func.func @transform_7(%arg0: i32) -> (i32, i32) {
    %c0_i32 = arith.constant 0 : i32
    %c0_i32_0 = arith.constant 0 : i32
    %c0_i32_1 = arith.constant 0 : i32
    return %c0_i32, %c0_i32_0 : i32, i32
  }
  func.func @transform_8(%arg0: i32) -> (i32, i32) {
    %c0_i32 = arith.constant 0 : i32
    %c0_i32_0 = arith.constant 0 : i32
    %c0_i32_1 = arith.constant 0 : i32
    return %c0_i32, %c0_i32_0 : i32, i32
  }
  func.func @transform_9(%arg0: i32) -> (i32, i32) {
    %c0_i32 = arith.constant 0 : i32
    %c0_i32_0 = arith.constant 0 : i32
    %c0_i32_1 = arith.constant 0 : i32
    return %c0_i32, %c0_i32_0 : i32, i32
  }
  func.func @transform_10(%arg0: i32) -> (i32, i32) {
    %c0_i32 = arith.constant 0 : i32
    %c0_i32_0 = arith.constant 0 : i32
    %c0_i32_1 = arith.constant 0 : i32
    return %c0_i32, %c0_i32_0 : i32, i32
  }
  func.func @transform_11(%arg0: i32) -> (i32, i32) {
    %c0_i32 = arith.constant 0 : i32
    %c0_i32_0 = arith.constant 0 : i32
    %c0_i32_1 = arith.constant 0 : i32
    return %c0_i32, %c0_i32_0 : i32, i32
  }
  func.func @transform_12(%arg0: i32) -> (i32, i32) {
    %c0_i32 = arith.constant 0 : i32
    %c0_i32_0 = arith.constant 0 : i32
    %c0_i32_1 = arith.constant 0 : i32
    return %c0_i32, %c0_i32_0 : i32, i32
  }
  func.func @transform_13(%arg0: i32) -> (i32, i32) {
    %c0_i32 = arith.constant 0 : i32
    %c0_i32_0 = arith.constant 0 : i32
    %c0_i32_1 = arith.constant 0 : i32
    return %c0_i32, %c0_i32_0 : i32, i32
  }
  func.func @transform_14(%arg0: i32) -> (i32, i32) {
    %c0_i32 = arith.constant 0 : i32
    %c0_i32_0 = arith.constant 0 : i32
    %c0_i32_1 = arith.constant 0 : i32
    return %c0_i32, %c0_i32_0 : i32, i32
  }
  func.func @transform_15(%arg0: i32) -> (i32, i32) {
    %c0_i32 = arith.constant 0 : i32
    %c0_i32_0 = arith.constant 0 : i32
    %c0_i32_1 = arith.constant 0 : i32
    return %c0_i32, %c0_i32_0 : i32, i32
  }
  func.func @transform_16(%arg0: i32) -> (i32, i32) {
    %c0_i32 = arith.constant 0 : i32
    %c0_i32_0 = arith.constant 0 : i32
    %c0_i32_1 = arith.constant 0 : i32
    return %c0_i32, %c0_i32_0 : i32, i32
  }
  func.func @transform_17(%arg0: i32) -> (i32, i32) {
    %c0_i32 = arith.constant 0 : i32
    %c0_i32_0 = arith.constant 0 : i32
    %c0_i32_1 = arith.constant 0 : i32
    return %c0_i32, %c0_i32_0 : i32, i32
  }
  func.func @transform_18(%arg0: i32) -> (i32, i32) {
    %c0_i32 = arith.constant 0 : i32
    %c0_i32_0 = arith.constant 0 : i32
    %c0_i32_1 = arith.constant 0 : i32
    return %c0_i32, %c0_i32_0 : i32, i32
  }
  func.func @transform_19(%arg0: i32) -> (i32, i32) {
    %c0_i32 = arith.constant 0 : i32
    %c0_i32_0 = arith.constant 0 : i32
    %c0_i32_1 = arith.constant 0 : i32
    return %c0_i32, %c0_i32_0 : i32, i32
  }
  func.func @transform_20(%arg0: i32) -> (i32, i32) {
    %c0_i32 = arith.constant 0 : i32
    %c0_i32_0 = arith.constant 0 : i32
    return %c0_i32, %arg0 : i32, i32
  }
}

</mosaic_0001>

<llo_original>
// kernel: tpu_custom_call.1
$region0: #{tpu_custom_call.1}
  #allocation0 [shape = 'u32[]', space=smem, size = 0x4, offset = 0x4, fixed_abs, tag = 'smem constant byte address 0x4 - core index']
  #allocation1 [shape = 'u32[72,128]{1,0:T(1,128)}', space=vmem, size = 0x9000, scoped, tag = 'internal scratch']
  %s0 = inlined_call_operand.vmem [shape: f32[8,32], index: 0, kind: input, shape index: {}]
  %s1 = inlined_call_operand.vmem [shape: f32[32,32], index: 1, kind: input, shape index: {}]
  %s2 = inlined_call_operand.vmem [shape: bf16[64,32], index: 2, kind: input, shape index: {}]
  %s3 = inlined_call_operand.vmem [shape: f32[64,1], index: 3, kind: input, shape index: {}]
  %s4 = inlined_call_operand.vmem [shape: bf16[32,64], index: 4, kind: input, shape index: {}]
  %s5 = inlined_call_operand.vmem [shape: f32[32,1], index: 5, kind: input, shape index: {}]
  %s6 = inlined_call_operand.vmem [shape: bf16[64,32], index: 6, kind: input, shape index: {}]
  %s7 = inlined_call_operand.vmem [shape: f32[64,1], index: 7, kind: input, shape index: {}]
  %s8 = inlined_call_operand.vmem [shape: bf16[32,64], index: 8, kind: input, shape index: {}]
  %s9 = inlined_call_operand.vmem [shape: f32[32,1], index: 9, kind: input, shape index: {}]
  %s10 = inlined_call_operand.vmem [shape: bf16[64,32], index: 10, kind: input, shape index: {}]
  %s11 = inlined_call_operand.vmem [shape: f32[64,1], index: 11, kind: input, shape index: {}]
  %s12 = inlined_call_operand.vmem [shape: bf16[32,64], index: 12, kind: input, shape index: {}]
  %s13 = inlined_call_operand.vmem [shape: f32[32,1], index: 13, kind: input, shape index: {}]
  %s14 = inlined_call_operand.vmem [shape: bf16[64,32], index: 14, kind: input, shape index: {}]
  %s15 = inlined_call_operand.vmem [shape: f32[64,1], index: 15, kind: input, shape index: {}]
  %s16 = inlined_call_operand.vmem [shape: bf16[32,64], index: 16, kind: input, shape index: {}]
  %s17 = inlined_call_operand.vmem [shape: f32[32,1], index: 17, kind: input, shape index: {}]
  %s18 = inlined_call_operand.vmem [shape: bf16[16,32], index: 18, kind: input, shape index: {}]
  %s19 = inlined_call_operand.vmem [shape: f32[16,1], index: 19, kind: input, shape index: {}]
  %s20 = inlined_call_operand.vmem [shape: f32[16,8], index: 20, kind: output, shape index: {}]
  %s21 = sld [smem:[#allocation0]]
  $region90: #{tpu_custom_call.1} parent=0
    _
  %s23 = ssub.s32 1, %s21
  %s24 = scalar_select 0, %s23, %s21
  // Predicated region
  $region2: #{tpu_custom_call.1} parent=0 // pred_check
    _
  $region3: #{tpu_custom_call.1} parent=0 // pred_check_branch
    %26 = sbr.rel (0) target = $region5
  $region4: #{tpu_custom_call.1} parent=0 // pred_region
    _
  $region5: #{tpu_custom_call.1} parent=0 // pred_fallthru
    _
  // Predicated region
  $region6: #{tpu_custom_call.1} parent=0 // pred_check
    _
  $region7: #{tpu_custom_call.1} parent=0 // pred_check_branch
    %28 = sbr.rel (0) target = $region9
  $region8: #{tpu_custom_call.1} parent=0 // pred_region
    _
  $region9: #{tpu_custom_call.1} parent=0 // pred_fallthru
    _
  // Predicated region
  $region10: #{tpu_custom_call.1} parent=0 // pred_check
    _
  $region11: #{tpu_custom_call.1} parent=0 // pred_check_branch
    %30 = sbr.rel (0) target = $region13
  $region12: #{tpu_custom_call.1} parent=0 // pred_region
    _
  $region13: #{tpu_custom_call.1} parent=0 // pred_fallthru
    _
  // Predicated region
  $region14: #{tpu_custom_call.1} parent=0 // pred_check
    _
  $region15: #{tpu_custom_call.1} parent=0 // pred_check_branch
    %32 = sbr.rel (0) target = $region17
  $region16: #{tpu_custom_call.1} parent=0 // pred_region
    _
  $region17: #{tpu_custom_call.1} parent=0 // pred_fallthru
    _
  // Predicated region
  $region18: #{tpu_custom_call.1} parent=0 // pred_check
    _
  $region19: #{tpu_custom_call.1} parent=0 // pred_check_branch
    %34 = sbr.rel (0) target = $region21
  $region20: #{tpu_custom_call.1} parent=0 // pred_region
    _
  $region21: #{tpu_custom_call.1} parent=0 // pred_fallthru
    _
  // Predicated region
  $region22: #{tpu_custom_call.1} parent=0 // pred_check
    _
  $region23: #{tpu_custom_call.1} parent=0 // pred_check_branch
    %36 = sbr.rel (0) target = $region25
  $region24: #{tpu_custom_call.1} parent=0 // pred_region
    _
  $region25: #{tpu_custom_call.1} parent=0 // pred_fallthru
    _
  // Predicated region
  $region26: #{tpu_custom_call.1} parent=0 // pred_check
    _
  $region27: #{tpu_custom_call.1} parent=0 // pred_check_branch
    %38 = sbr.rel (0) target = $region29
  $region28: #{tpu_custom_call.1} parent=0 // pred_region
    _
  $region29: #{tpu_custom_call.1} parent=0 // pred_fallthru
    _
  // Predicated region
  $region30: #{tpu_custom_call.1} parent=0 // pred_check
    _
  $region31: #{tpu_custom_call.1} parent=0 // pred_check_branch
    %40 = sbr.rel (0) target = $region33
  $region32: #{tpu_custom_call.1} parent=0 // pred_region
    _
  $region33: #{tpu_custom_call.1} parent=0 // pred_fallthru
    _
  // Predicated region
  $region34: #{tpu_custom_call.1} parent=0 // pred_check
    _
  $region35: #{tpu_custom_call.1} parent=0 // pred_check_branch
    %42 = sbr.rel (0) target = $region37
  $region36: #{tpu_custom_call.1} parent=0 // pred_region
    _
  $region37: #{tpu_custom_call.1} parent=0 // pred_fallthru
    _
  // Predicated region
  $region38: #{tpu_custom_call.1} parent=0 // pred_check
    _
  $region39: #{tpu_custom_call.1} parent=0 // pred_check_branch
    %44 = sbr.rel (0) target = $region41
  $region40: #{tpu_custom_call.1} parent=0 // pred_region
    _
  $region41: #{tpu_custom_call.1} parent=0 // pred_fallthru
    _
  // Predicated region
  $region42: #{tpu_custom_call.1} parent=0 // pred_check
    _
  $region43: #{tpu_custom_call.1} parent=0 // pred_check_branch
    %46 = sbr.rel (0) target = $region45
  $region44: #{tpu_custom_call.1} parent=0 // pred_region
    _
  $region45: #{tpu_custom_call.1} parent=0 // pred_fallthru
    _
  // Predicated region
  $region46: #{tpu_custom_call.1} parent=0 // pred_check
    _
  $region47: #{tpu_custom_call.1} parent=0 // pred_check_branch
    %48 = sbr.rel (0) target = $region49
  $region48: #{tpu_custom_call.1} parent=0 // pred_region
    _
  $region49: #{tpu_custom_call.1} parent=0 // pred_fallthru
    _
  // Predicated region
  $region50: #{tpu_custom_call.1} parent=0 // pred_check
    _
  $region51: #{tpu_custom_call.1} parent=0 // pred_check_branch
    %50 = sbr.rel (0) target = $region53
  $region52: #{tpu_custom_call.1} parent=0 // pred_region
    _
  $region53: #{tpu_custom_call.1} parent=0 // pred_fallthru
    _
  // Predicated region
  $region54: #{tpu_custom_call.1} parent=0 // pred_check
    _
  $region55: #{tpu_custom_call.1} parent=0 // pred_check_branch
    %52 = sbr.rel (0) target = $region57
  $region56: #{tpu_custom_call.1} parent=0 // pred_region
    _
  $region57: #{tpu_custom_call.1} parent=0 // pred_fallthru
    _
  // Predicated region
  $region58: #{tpu_custom_call.1} parent=0 // pred_check
    _
  $region59: #{tpu_custom_call.1} parent=0 // pred_check_branch
    %54 = sbr.rel (0) target = $region61
  $region60: #{tpu_custom_call.1} parent=0 // pred_region
    _
  $region61: #{tpu_custom_call.1} parent=0 // pred_fallthru
    _
  // Predicated region
  $region62: #{tpu_custom_call.1} parent=0 // pred_check
    _
  $region63: #{tpu_custom_call.1} parent=0 // pred_check_branch
    %56 = sbr.rel (0) target = $region65
  $region64: #{tpu_custom_call.1} parent=0 // pred_region
    _
  $region65: #{tpu_custom_call.1} parent=0 // pred_fallthru
    _
  // Predicated region
  $region66: #{tpu_custom_call.1} parent=0 // pred_check
    _
  $region67: #{tpu_custom_call.1} parent=0 // pred_check_branch
    %58 = sbr.rel (0) target = $region69
  $region68: #{tpu_custom_call.1} parent=0 // pred_region
    _
  $region69: #{tpu_custom_call.1} parent=0 // pred_fallthru
    _
  // Predicated region
  $region70: #{tpu_custom_call.1} parent=0 // pred_check
    _
  $region71: #{tpu_custom_call.1} parent=0 // pred_check_branch
    %60 = sbr.rel (0) target = $region73
  $region72: #{tpu_custom_call.1} parent=0 // pred_region
    _
  $region73: #{tpu_custom_call.1} parent=0 // pred_fallthru
    _
  // Predicated region
  $region74: #{tpu_custom_call.1} parent=0 // pred_check
    _
  $region75: #{tpu_custom_call.1} parent=0 // pred_check_branch
    %62 = sbr.rel (0) target = $region77
  $region76: #{tpu_custom_call.1} parent=0 // pred_region
    _
  $region77: #{tpu_custom_call.1} parent=0 // pred_fallthru
    _
  // Predicated region
  $region78: #{tpu_custom_call.1} parent=0 // pred_check
    _
  $region79: #{tpu_custom_call.1} parent=0 // pred_check_branch
    %64 = sbr.rel (0) target = $region81
  $region80: #{tpu_custom_call.1} parent=0 // pred_region
    _
  $region81: #{tpu_custom_call.1} parent=0 // pred_fallthru
    _
  %v66 = vld [vmem:[%s0] sm:$0xff]
  %v67 = vld [vmem:[%s1] sm:$0xff]
  %v68 = vld [vmem:[%s1 + $0x8] sm:$0xff]
  %v69 = vld [vmem:[%s1 + $0x10] sm:$0xff]
  %v70 = vld [vmem:[%s1 + $0x18] sm:$0xff]
  %vm71 = vcmask 261120
  %v73 = vsel %vm71, %v67, 0
  %v76 = vsel %vm71, %v68, 0
  %v79 = vsel %vm71, %v69, 0
  %v82 = vsel %vm71, %v70, 0
  %v85 = vsel %vm71, %v66, 0
  %87 = vmatpush.xpose.msra.mxu0 0.0
  %88 = vmatpush.xpose.msra.mxu0 0.0
  %89 = vmatpush.xpose.msra.mxu0 0.0
  %90 = vmatpush.xpose.msra.mxu0 0.0
  %91 = vmatpush.xpose.msra.mxu0 0.0
  %92 = vmatpush.xpose.msra.mxu0 0.0
  %93 = vmatpush.xpose.msra.mxu0 0.0
  %94 = vmatpush.xpose.msra.mxu0 0.0
  %95 = vmatpush.xpose.msra.mxu0 0.0
  %96 = vmatpush.xpose.msra.mxu0 0.0
  %97 = vmatpush.xpose.msra.mxu0 0.0
  %98 = vmatpush.xpose.msra.mxu0 0.0
  %99 = vmatpush.xpose.msra.mxu0 0.0
  %100 = vmatpush.xpose.msra.mxu0 0.0
  %101 = vmatpush.xpose.msra.mxu0 0.0
  %102 = vmatpush.xpose.msra.mxu0 %v85
  %103 = vmatmul.f32.gmra.mxu0 %v73
  %v104 = vpop.f32.mrf.mxu0
  %v105 = vadd.f32 0.0, %v104
  %106 = vmatmul.f32.gmra.mxu0 %v76
  %v107 = vpop.f32.mrf.mxu0
  %v108 = vadd.f32 0.0, %v107
  %109 = vmatmul.f32.gmra.mxu0 %v79
  %v110 = vpop.f32.mrf.mxu0
  %v111 = vadd.f32 0.0, %v110
  %112 = vmatmul.f32.gmra.mxu0 %v82
  %v113 = vpop.f32.mrf.mxu0
  %v114 = vadd.f32 0.0, %v113
  %115 = vdwg.mxu0
  %v116 = vld [vmem:[%s2] sm:$0xf]
  %v117 = vld [vmem:[%s2 + $0x4] sm:$0xf]
  %v118 = vld [vmem:[%s2 + $0x8] sm:$0xf]
  %v119 = vld [vmem:[%s2 + $0xc] sm:$0xf]
  %v120 = vld [vmem:[%s2 + $0x10] sm:$0xf]
  %v121 = vld [vmem:[%s2 + $0x14] sm:$0xf]
  %v122 = vld [vmem:[%s2 + $0x18] sm:$0xf]
  %v123 = vld [vmem:[%s2 + $0x1c] sm:$0xf]
  %v124 = vpack.c.bf16 %v108, %v105
  %v125 = vpack.c.bf16 %v114, %v111
  %v126 = vld [vmem:[%s3] sm:$0xff]
  %v127 = vld [vmem:[%s3 + $0x8] sm:$0xff]
  %v128 = vld [vmem:[%s3 + $0x10] sm:$0xff]
  %v129 = vld [vmem:[%s3 + $0x18] sm:$0xff]
  %v130 = vld [vmem:[%s3 + $0x20] sm:$0xff]
  %v131 = vld [vmem:[%s3 + $0x28] sm:$0xff]
  %v132 = vld [vmem:[%s3 + $0x30] sm:$0xff]
  %v133 = vld [vmem:[%s3 + $0x38] sm:$0xff]
  %135 = vset.pattern.permute.xlu0 0
  %136 = vperm.xlu0 %135, %v126
  %v137 = vpop.permute.xlu0 %136
  %140 = vset.pattern.permute.xlu0 0
  %141 = vperm.xlu0 %140, %v127
  %v142 = vpop.permute.xlu0 %141
  %145 = vset.pattern.permute.xlu0 0
  %146 = vperm.xlu0 %145, %v128
  %v147 = vpop.permute.xlu0 %146
  %150 = vset.pattern.permute.xlu0 0
  %151 = vperm.xlu0 %150, %v129
  %v152 = vpop.permute.xlu0 %151
  %155 = vset.pattern.permute.xlu0 0
  %156 = vperm.xlu0 %155, %v130
  %v157 = vpop.permute.xlu0 %156
  %160 = vset.pattern.permute.xlu0 0
  %161 = vperm.xlu0 %160, %v131
  %v162 = vpop.permute.xlu0 %161
  %165 = vset.pattern.permute.xlu0 0
  %166 = vperm.xlu0 %165, %v132
  %v167 = vpop.permute.xlu0 %166
  %170 = vset.pattern.permute.xlu0 0
  %171 = vperm.xlu0 %170, %v133
  %v172 = vpop.permute.xlu0 %171
  %v182 = vunpack.c.l.b16 %v116
  %v183 = vunpack.c.l.b16 %v117
  %v184 = vunpack.c.l.b16 %v118
  %v185 = vunpack.c.l.b16 %v119
  %v186 = vunpack.c.l.b16 %v120
  %v187 = vunpack.c.l.b16 %v121
  %v188 = vunpack.c.l.b16 %v122
  %v189 = vunpack.c.l.b16 %v123
  %v190 = vpack.c.b16 %v183, %v182
  %v191 = vpack.c.b16 %v185, %v184
  %v192 = vpack.c.b16 %v187, %v186
  %v193 = vpack.c.b16 %v189, %v188
  %v195 = vsel %vm71, %v190, 0
  %v198 = vsel %vm71, %v191, 0
  %v201 = vsel %vm71, %v192, 0
  %v204 = vsel %vm71, %v193, 0
  %206 = vmatpush.bf16.msra.mxu0 0
  %207 = vmatpush.bf16.msra.mxu0 0
  %208 = vmatpush.bf16.msra.mxu0 0
  %209 = vmatpush.bf16.msra.mxu0 0
  %210 = vmatpush.bf16.msra.mxu0 0
  %211 = vmatpush.bf16.msra.mxu0 0
  %212 = vmatpush.bf16.msra.mxu0 %v125
  %213 = vmatpush.bf16.msra.mxu0 %v124
  %214 = vmatmul.bf16.gmra.mxu0 %v195
  %v215 = vpop.f32.mrf.mxu0
  %v216 = vadd.f32 %v137, %v215
  %v217 = vpop.f32.mrf.mxu0
  %v218 = vadd.f32 %v142, %v217
  %219 = vmatmul.bf16.gmra.mxu0 %v198
  %v220 = vpop.f32.mrf.mxu0
  %v221 = vadd.f32 %v147, %v220
  %v222 = vpop.f32.mrf.mxu0
  %v223 = vadd.f32 %v152, %v222
  %224 = vmatmul.bf16.gmra.mxu0 %v201
  %v225 = vpop.f32.mrf.mxu0
  %v226 = vadd.f32 %v157, %v225
  %v227 = vpop.f32.mrf.mxu0
  %v228 = vadd.f32 %v162, %v227
  %229 = vmatmul.bf16.gmra.mxu0 %v204
  %v230 = vpop.f32.mrf.mxu0
  %v231 = vadd.f32 %v167, %v230
  %v232 = vpop.f32.mrf.mxu0
  %v233 = vadd.f32 %v172, %v232
  %234 = vdwg.mxu0
  %vm235 = vcmp.gt.f32.partialorder %v216, 0.0
  %vm236 = vcmp.gt.f32.partialorder %v218, 0.0
  %vm237 = vcmp.gt.f32.partialorder %v221, 0.0
  %vm238 = vcmp.gt.f32.partialorder %v223, 0.0
  %vm239 = vcmp.gt.f32.partialorder %v226, 0.0
  %vm240 = vcmp.gt.f32.partialorder %v228, 0.0
  %vm241 = vcmp.gt.f32.partialorder %v231, 0.0
  %vm242 = vcmp.gt.f32.partialorder %v233, 0.0
  %v243 = vmul.f32 %v216, 0.01
  %v244 = vmul.f32 %v218, 0.01
  %v245 = vmul.f32 %v221, 0.01
  %v246 = vmul.f32 %v223, 0.01
  %v247 = vmul.f32 %v226, 0.01
  %v248 = vmul.f32 %v228, 0.01
  %v249 = vmul.f32 %v231, 0.01
  %v250 = vmul.f32 %v233, 0.01
  %v251 = vsel %vm235, %v216, %v243
  %v252 = vsel %vm236, %v218, %v244
  %v253 = vsel %vm237, %v221, %v245
  %v254 = vsel %vm238, %v223, %v246
  %v255 = vsel %vm239, %v226, %v247
  %v256 = vsel %vm240, %v228, %v248
  %v257 = vsel %vm241, %v231, %v249
  %v258 = vsel %vm242, %v233, %v250
  %v259 = vld [vmem:[%s4] sm:$0xf]
  %v260 = vld [vmem:[%s4 + $0x4] sm:$0xf]
  %v261 = vld [vmem:[%s4 + $0x8] sm:$0xf]
  %v262 = vld [vmem:[%s4 + $0xc] sm:$0xf]
  %v263 = vpack.c.bf16 %v252, %v251
  %v264 = vpack.c.bf16 %v254, %v253
  %v265 = vpack.c.bf16 %v256, %v255
  %v266 = vpack.c.bf16 %v258, %v257
  %v267 = vld [vmem:[%s5] sm:$0xff]
  %v268 = vld [vmem:[%s5 + $0x8] sm:$0xff]
  %v269 = vld [vmem:[%s5 + $0x10] sm:$0xff]
  %v270 = vld [vmem:[%s5 + $0x18] sm:$0xff]
  %272 = vset.pattern.permute.xlu0 0
  %273 = vperm.xlu0 %272, %v267
  %v274 = vpop.permute.xlu0 %273
  %277 = vset.pattern.permute.xlu0 0
  %278 = vperm.xlu0 %277, %v268
  %v279 = vpop.permute.xlu0 %278
  %282 = vset.pattern.permute.xlu0 0
  %283 = vperm.xlu0 %282, %v269
  %v284 = vpop.permute.xlu0 %283
  %287 = vset.pattern.permute.xlu0 0
  %288 = vperm.xlu0 %287, %v270
  %v289 = vpop.permute.xlu0 %288
  %v295 = vunpack.c.l.b16 %v259
  %v296 = vunpack.c.l.b16 %v260
  %v297 = vunpack.c.l.b16 %v261
  %v298 = vunpack.c.l.b16 %v262
  %v299 = vpack.c.b16 %v296, %v295
  %v300 = vpack.c.b16 %v298, %v297
  %vm301 = vcmask 523264
  %v303 = vsel %vm301, %v299, 0
  %v306 = vsel %vm301, %v300, 0
  %308 = vmatpush.bf16.msra.mxu0 0
  %309 = vmatpush.bf16.msra.mxu0 0
  %310 = vmatpush.bf16.msra.mxu0 0
  %311 = vmatpush.bf16.msra.mxu0 0
  %312 = vmatpush.bf16.msra.mxu0 %v266
  %313 = vmatpush.bf16.msra.mxu0 %v265
  %314 = vmatpush.bf16.msra.mxu0 %v264
  %315 = vmatpush.bf16.msra.mxu0 %v263
  %316 = vmatmul.bf16.gmra.mxu0 %v303
  %v317 = vpop.f32.mrf.mxu0
  %v318 = vadd.f32 %v274, %v317
  %v319 = vpop.f32.mrf.mxu0
  %v320 = vadd.f32 %v279, %v319
  %321 = vmatmul.bf16.gmra.mxu0 %v306
  %v322 = vpop.f32.mrf.mxu0
  %v323 = vadd.f32 %v284, %v322
  %v324 = vpop.f32.mrf.mxu0
  %v325 = vadd.f32 %v289, %v324
  %326 = vdwg.mxu0
  %vm327 = vcmp.gt.f32.partialorder %v318, 0.0
  %vm328 = vcmp.gt.f32.partialorder %v320, 0.0
  %vm329 = vcmp.gt.f32.partialorder %v323, 0.0
  %vm330 = vcmp.gt.f32.partialorder %v325, 0.0
  %v331 = vmul.f32 %v318, 0.01
  %v332 = vmul.f32 %v320, 0.01
  %v333 = vmul.f32 %v323, 0.01
  %v334 = vmul.f32 %v325, 0.01
  %v335 = vsel %vm327, %v318, %v331
  %v336 = vsel %vm328, %v320, %v332
  %v337 = vsel %vm329, %v323, %v333
  %v338 = vsel %vm330, %v325, %v334
  %v339 = vadd.f32 %v105, %v335
  %v340 = vadd.f32 %v108, %v336
  %v341 = vadd.f32 %v111, %v337
  %v342 = vadd.f32 %v114, %v338
  %v343 = vld [vmem:[%s6] sm:$0xf]
  %v344 = vld [vmem:[%s6 + $0x4] sm:$0xf]
  %v345 = vld [vmem:[%s6 + $0x8] sm:$0xf]
  %v346 = vld [vmem:[%s6 + $0xc] sm:$0xf]
  %v347 = vld [vmem:[%s6 + $0x10] sm:$0xf]
  %v348 = vld [vmem:[%s6 + $0x14] sm:$0xf]
  %v349 = vld [vmem:[%s6 + $0x18] sm:$0xf]
  %v350 = vld [vmem:[%s6 + $0x1c] sm:$0xf]
  %v351 = vpack.c.bf16 %v340, %v339
  %v352 = vpack.c.bf16 %v342, %v341
  %v353 = vld [vmem:[%s7] sm:$0xff]
  %v354 = vld [vmem:[%s7 + $0x8] sm:$0xff]
  %v355 = vld [vmem:[%s7 + $0x10] sm:$0xff]
  %v356 = vld [vmem:[%s7 + $0x18] sm:$0xff]
  %v357 = vld [vmem:[%s7 + $0x20] sm:$0xff]
  %v358 = vld [vmem:[%s7 + $0x28] sm:$0xff]
  %v359 = vld [vmem:[%s7 + $0x30] sm:$0xff]
  %v360 = vld [vmem:[%s7 + $0x38] sm:$0xff]
  %362 = vset.pattern.permute.xlu0 0
  %363 = vperm.xlu0 %362, %v353
  %v364 = vpop.permute.xlu0 %363
  %367 = vset.pattern.permute.xlu0 0
  %368 = vperm.xlu0 %367, %v354
  %v369 = vpop.permute.xlu0 %368
  %372 = vset.pattern.permute.xlu0 0
  %373 = vperm.xlu0 %372, %v355
  %v374 = vpop.permute.xlu0 %373
  %377 = vset.pattern.permute.xlu0 0
  %378 = vperm.xlu0 %377, %v356
  %v379 = vpop.permute.xlu0 %378
  %382 = vset.pattern.permute.xlu0 0
  %383 = vperm.xlu0 %382, %v357
  %v384 = vpop.permute.xlu0 %383
  %387 = vset.pattern.permute.xlu0 0
  %388 = vperm.xlu0 %387, %v358
  %v389 = vpop.permute.xlu0 %388
  %392 = vset.pattern.permute.xlu0 0
  %393 = vperm.xlu0 %392, %v359
  %v394 = vpop.permute.xlu0 %393
  %397 = vset.pattern.permute.xlu0 0
  %398 = vperm.xlu0 %397, %v360
  %v399 = vpop.permute.xlu0 %398
  %v409 = vunpack.c.l.b16 %v343
  %v410 = vunpack.c.l.b16 %v344
  %v411 = vunpack.c.l.b16 %v345
  %v412 = vunpack.c.l.b16 %v346
  %v413 = vunpack.c.l.b16 %v347
  %v414 = vunpack.c.l.b16 %v348
  %v415 = vunpack.c.l.b16 %v349
  %v416 = vunpack.c.l.b16 %v350
  %v417 = vpack.c.b16 %v410, %v409
  %v418 = vpack.c.b16 %v412, %v411
  %v419 = vpack.c.b16 %v414, %v413
  %v420 = vpack.c.b16 %v416, %v415
  %v422 = vsel %vm71, %v417, 0
  %v425 = vsel %vm71, %v418, 0
  %v428 = vsel %vm71, %v419, 0
  %v431 = vsel %vm71, %v420, 0
  %433 = vmatpush.bf16.msra.mxu0 0
  %434 = vmatpush.bf16.msra.mxu0 0
  %435 = vmatpush.bf16.msra.mxu0 0
  %436 = vmatpush.bf16.msra.mxu0 0
  %437 = vmatpush.bf16.msra.mxu0 0
  %438 = vmatpush.bf16.msra.mxu0 0
  %439 = vmatpush.bf16.msra.mxu0 %v352
  %440 = vmatpush.bf16.msra.mxu0 %v351
  %441 = vmatmul.bf16.gmra.mxu0 %v422
  %v442 = vpop.f32.mrf.mxu0
  %v443 = vadd.f32 %v364, %v442
  %v444 = vpop.f32.mrf.mxu0
  %v445 = vadd.f32 %v369, %v444
  %446 = vmatmul.bf16.gmra.mxu0 %v425
  %v447 = vpop.f32.mrf.mxu0
  %v448 = vadd.f32 %v374, %v447
  %v449 = vpop.f32.mrf.mxu0
  %v450 = vadd.f32 %v379, %v449
  %451 = vmatmul.bf16.gmra.mxu0 %v428
  %v452 = vpop.f32.mrf.mxu0
  %v453 = vadd.f32 %v384, %v452
  %v454 = vpop.f32.mrf.mxu0
  %v455 = vadd.f32 %v389, %v454
  %456 = vmatmul.bf16.gmra.mxu0 %v431
  %v457 = vpop.f32.mrf.mxu0
  %v458 = vadd.f32 %v394, %v457
  %v459 = vpop.f32.mrf.mxu0
  %v460 = vadd.f32 %v399, %v459
  %461 = vdwg.mxu0
  %vm462 = vcmp.gt.f32.partialorder %v443, 0.0
  %vm463 = vcmp.gt.f32.partialorder %v445, 0.0
  %vm464 = vcmp.gt.f32.partialorder %v448, 0.0
  %vm465 = vcmp.gt.f32.partialorder %v450, 0.0
  %vm466 = vcmp.gt.f32.partialorder %v453, 0.0
  %vm467 = vcmp.gt.f32.partialorder %v455, 0.0
  %vm468 = vcmp.gt.f32.partialorder %v458, 0.0
  %vm469 = vcmp.gt.f32.partialorder %v460, 0.0
  %v470 = vmul.f32 %v443, 0.01
  %v471 = vmul.f32 %v445, 0.01
  %v472 = vmul.f32 %v448, 0.01
  %v473 = vmul.f32 %v450, 0.01
  %v474 = vmul.f32 %v453, 0.01
  %v475 = vmul.f32 %v455, 0.01
  %v476 = vmul.f32 %v458, 0.01
  %v477 = vmul.f32 %v460, 0.01
  %v478 = vsel %vm462, %v443, %v470
  %v479 = vsel %vm463, %v445, %v471
  %v480 = vsel %vm464, %v448, %v472
  %v481 = vsel %vm465, %v450, %v473
  %v482 = vsel %vm466, %v453, %v474
  %v483 = vsel %vm467, %v455, %v475
  %v484 = vsel %vm468, %v458, %v476
  %v485 = vsel %vm469, %v460, %v477
  %v486 = vld [vmem:[%s8] sm:$0xf]
  %v487 = vld [vmem:[%s8 + $0x4] sm:$0xf]
  %v488 = vld [vmem:[%s8 + $0x8] sm:$0xf]
  %v489 = vld [vmem:[%s8 + $0xc] sm:$0xf]
  %v490 = vpack.c.bf16 %v479, %v478
  %v491 = vpack.c.bf16 %v481, %v480
  %v492 = vpack.c.bf16 %v483, %v482
  %v493 = vpack.c.bf16 %v485, %v484
  %v494 = vld [vmem:[%s9] sm:$0xff]
  %v495 = vld [vmem:[%s9 + $0x8] sm:$0xff]
  %v496 = vld [vmem:[%s9 + $0x10] sm:$0xff]
  %v497 = vld [vmem:[%s9 + $0x18] sm:$0xff]
  %499 = vset.pattern.permute.xlu0 0
  %500 = vperm.xlu0 %499, %v494
  %v501 = vpop.permute.xlu0 %500
  %504 = vset.pattern.permute.xlu0 0
  %505 = vperm.xlu0 %504, %v495
  %v506 = vpop.permute.xlu0 %505
  %509 = vset.pattern.permute.xlu0 0
  %510 = vperm.xlu0 %509, %v496
  %v511 = vpop.permute.xlu0 %510
  %514 = vset.pattern.permute.xlu0 0
  %515 = vperm.xlu0 %514, %v497
  %v516 = vpop.permute.xlu0 %515
  %v522 = vunpack.c.l.b16 %v486
  %v523 = vunpack.c.l.b16 %v487
  %v524 = vunpack.c.l.b16 %v488
  %v525 = vunpack.c.l.b16 %v489
  %v526 = vpack.c.b16 %v523, %v522
  %v527 = vpack.c.b16 %v525, %v524
  %v529 = vsel %vm301, %v526, 0
  %v532 = vsel %vm301, %v527, 0
  %534 = vmatpush.bf16.msra.mxu0 0
  %535 = vmatpush.bf16.msra.mxu0 0
  %536 = vmatpush.bf16.msra.mxu0 0
  %537 = vmatpush.bf16.msra.mxu0 0
  %538 = vmatpush.bf16.msra.mxu0 %v493
  %539 = vmatpush.bf16.msra.mxu0 %v492
  %540 = vmatpush.bf16.msra.mxu0 %v491
  %541 = vmatpush.bf16.msra.mxu0 %v490
  %542 = vmatmul.bf16.gmra.mxu0 %v529
  %v543 = vpop.f32.mrf.mxu0
  %v544 = vadd.f32 %v501, %v543
  %v545 = vpop.f32.mrf.mxu0
  %v546 = vadd.f32 %v506, %v545
  %547 = vmatmul.bf16.gmra.mxu0 %v532
  %v548 = vpop.f32.mrf.mxu0
  %v549 = vadd.f32 %v511, %v548
  %v550 = vpop.f32.mrf.mxu0
  %v551 = vadd.f32 %v516, %v550
  %552 = vdwg.mxu0
  %vm553 = vcmp.gt.f32.partialorder %v544, 0.0
  %vm554 = vcmp.gt.f32.partialorder %v546, 0.0
  %vm555 = vcmp.gt.f32.partialorder %v549, 0.0
  %vm556 = vcmp.gt.f32.partialorder %v551, 0.0
  %v557 = vmul.f32 %v544, 0.01
  %v558 = vmul.f32 %v546, 0.01
  %v559 = vmul.f32 %v549, 0.01
  %v560 = vmul.f32 %v551, 0.01
  %v561 = vsel %vm553, %v544, %v557
  %v562 = vsel %vm554, %v546, %v558
  %v563 = vsel %vm555, %v549, %v559
  %v564 = vsel %vm556, %v551, %v560
  %v565 = vadd.f32 %v339, %v561
  %v566 = vadd.f32 %v340, %v562
  %v567 = vadd.f32 %v341, %v563
  %v568 = vadd.f32 %v342, %v564
  %v569 = vld [vmem:[%s10] sm:$0xf]
  %v570 = vld [vmem:[%s10 + $0x4] sm:$0xf]
  %v571 = vld [vmem:[%s10 + $0x8] sm:$0xf]
  %v572 = vld [vmem:[%s10 + $0xc] sm:$0xf]
  %v573 = vld [vmem:[%s10 + $0x10] sm:$0xf]
  %v574 = vld [vmem:[%s10 + $0x14] sm:$0xf]
  %v575 = vld [vmem:[%s10 + $0x18] sm:$0xf]
  %v576 = vld [vmem:[%s10 + $0x1c] sm:$0xf]
  %v577 = vpack.c.bf16 %v566, %v565
  %v578 = vpack.c.bf16 %v568, %v567
  %v579 = vld [vmem:[%s11] sm:$0xff]
  %v580 = vld [vmem:[%s11 + $0x8] sm:$0xff]
  %v581 = vld [vmem:[%s11 + $0x10] sm:$0xff]
  %v582 = vld [vmem:[%s11 + $0x18] sm:$0xff]
  %v583 = vld [vmem:[%s11 + $0x20] sm:$0xff]
  %v584 = vld [vmem:[%s11 + $0x28] sm:$0xff]
  %v585 = vld [vmem:[%s11 + $0x30] sm:$0xff]
  %v586 = vld [vmem:[%s11 + $0x38] sm:$0xff]
  %588 = vset.pattern.permute.xlu0 0
  %589 = vperm.xlu0 %588, %v579
  %v590 = vpop.permute.xlu0 %589
  %593 = vset.pattern.permute.xlu0 0
  %594 = vperm.xlu0 %593, %v580
  %v595 = vpop.permute.xlu0 %594
  %598 = vset.pattern.permute.xlu0 0
  %599 = vperm.xlu0 %598, %v581
  %v600 = vpop.permute.xlu0 %599
  %603 = vset.pattern.permute.xlu0 0
  %604 = vperm.xlu0 %603, %v582
  %v605 = vpop.permute.xlu0 %604
  %608 = vset.pattern.permute.xlu0 0
  %609 = vperm.xlu0 %608, %v583
  %v610 = vpop.permute.xlu0 %609
  %613 = vset.pattern.permute.xlu0 0
  %614 = vperm.xlu0 %613, %v584
  %v615 = vpop.permute.xlu0 %614
  %618 = vset.pattern.permute.xlu0 0
  %619 = vperm.xlu0 %618, %v585
  %v620 = vpop.permute.xlu0 %619
  %623 = vset.pattern.permute.xlu0 0
  %624 = vperm.xlu0 %623, %v586
  %v625 = vpop.permute.xlu0 %624
  %v635 = vunpack.c.l.b16 %v569
  %v636 = vunpack.c.l.b16 %v570
  %v637 = vunpack.c.l.b16 %v571
  %v638 = vunpack.c.l.b16 %v572
  %v639 = vunpack.c.l.b16 %v573
  %v640 = vunpack.c.l.b16 %v574
  %v641 = vunpack.c.l.b16 %v575
  %v642 = vunpack.c.l.b16 %v576
  %v643 = vpack.c.b16 %v636, %v635
  %v644 = vpack.c.b16 %v638, %v637
  %v645 = vpack.c.b16 %v640, %v639
  %v646 = vpack.c.b16 %v642, %v641
  %v648 = vsel %vm71, %v643, 0
  %v651 = vsel %vm71, %v644, 0
  %v654 = vsel %vm71, %v645, 0
  %v657 = vsel %vm71, %v646, 0
  %659 = vmatpush.bf16.msra.mxu0 0
  %660 = vmatpush.bf16.msra.mxu0 0
  %661 = vmatpush.bf16.msra.mxu0 0
  %662 = vmatpush.bf16.msra.mxu0 0
  %663 = vmatpush.bf16.msra.mxu0 0
  %664 = vmatpush.bf16.msra.mxu0 0
  %665 = vmatpush.bf16.msra.mxu0 %v578
  %666 = vmatpush.bf16.msra.mxu0 %v577
  %667 = vmatmul.bf16.gmra.mxu0 %v648
  %v668 = vpop.f32.mrf.mxu0
  %v669 = vadd.f32 %v590, %v668
  %v670 = vpop.f32.mrf.mxu0
  %v671 = vadd.f32 %v595, %v670
  %672 = vmatmul.bf16.gmra.mxu0 %v651
  %v673 = vpop.f32.mrf.mxu0
  %v674 = vadd.f32 %v600, %v673
  %v675 = vpop.f32.mrf.mxu0
  %v676 = vadd.f32 %v605, %v675
  %677 = vmatmul.bf16.gmra.mxu0 %v654
  %v678 = vpop.f32.mrf.mxu0
  %v679 = vadd.f32 %v610, %v678
  %v680 = vpop.f32.mrf.mxu0
  %v681 = vadd.f32 %v615, %v680
  %682 = vmatmul.bf16.gmra.mxu0 %v657
  %v683 = vpop.f32.mrf.mxu0
  %v684 = vadd.f32 %v620, %v683
  %v685 = vpop.f32.mrf.mxu0
  %v686 = vadd.f32 %v625, %v685
  %687 = vdwg.mxu0
  %vm688 = vcmp.gt.f32.partialorder %v669, 0.0
  %vm689 = vcmp.gt.f32.partialorder %v671, 0.0
  %vm690 = vcmp.gt.f32.partialorder %v674, 0.0
  %vm691 = vcmp.gt.f32.partialorder %v676, 0.0
  %vm692 = vcmp.gt.f32.partialorder %v679, 0.0
  %vm693 = vcmp.gt.f32.partialorder %v681, 0.0
  %vm694 = vcmp.gt.f32.partialorder %v684, 0.0
  %vm695 = vcmp.gt.f32.partialorder %v686, 0.0
  %v696 = vmul.f32 %v669, 0.01
  %v697 = vmul.f32 %v671, 0.01
  %v698 = vmul.f32 %v674, 0.01
  %v699 = vmul.f32 %v676, 0.01
  %v700 = vmul.f32 %v679, 0.01
  %v701 = vmul.f32 %v681, 0.01
  %v702 = vmul.f32 %v684, 0.01
  %v703 = vmul.f32 %v686, 0.01
  %v704 = vsel %vm688, %v669, %v696
  %v705 = vsel %vm689, %v671, %v697
  %v706 = vsel %vm690, %v674, %v698
  %v707 = vsel %vm691, %v676, %v699
  %v708 = vsel %vm692, %v679, %v700
  %v709 = vsel %vm693, %v681, %v701
  %v710 = vsel %vm694, %v684, %v702
  %v711 = vsel %vm695, %v686, %v703
  %v712 = vld [vmem:[%s12] sm:$0xf]
  %v713 = vld [vmem:[%s12 + $0x4] sm:$0xf]
  %v714 = vld [vmem:[%s12 + $0x8] sm:$0xf]
  %v715 = vld [vmem:[%s12 + $0xc] sm:$0xf]
  %v716 = vpack.c.bf16 %v705, %v704
  %v717 = vpack.c.bf16 %v707, %v706
  %v718 = vpack.c.bf16 %v709, %v708
  %v719 = vpack.c.bf16 %v711, %v710
  %v720 = vld [vmem:[%s13] sm:$0xff]
  %v721 = vld [vmem:[%s13 + $0x8] sm:$0xff]
  %v722 = vld [vmem:[%s13 + $0x10] sm:$0xff]
  %v723 = vld [vmem:[%s13 + $0x18] sm:$0xff]
  %725 = vset.pattern.permute.xlu0 0
  %726 = vperm.xlu0 %725, %v720
  %v727 = vpop.permute.xlu0 %726
  %730 = vset.pattern.permute.xlu0 0
  %731 = vperm.xlu0 %730, %v721
  %v732 = vpop.permute.xlu0 %731
  %735 = vset.pattern.permute.xlu0 0
  %736 = vperm.xlu0 %735, %v722
  %v737 = vpop.permute.xlu0 %736
  %740 = vset.pattern.permute.xlu0 0
  %741 = vperm.xlu0 %740, %v723
  %v742 = vpop.permute.xlu0 %741
  %v748 = vunpack.c.l.b16 %v712
  %v749 = vunpack.c.l.b16 %v713
  %v750 = vunpack.c.l.b16 %v714
  %v751 = vunpack.c.l.b16 %v715
  %v752 = vpack.c.b16 %v749, %v748
  %v753 = vpack.c.b16 %v751, %v750
  %v755 = vsel %vm301, %v752, 0
  %v758 = vsel %vm301, %v753, 0
  %760 = vmatpush.bf16.msra.mxu0 0
  %761 = vmatpush.bf16.msra.mxu0 0
  %762 = vmatpush.bf16.msra.mxu0 0
  %763 = vmatpush.bf16.msra.mxu0 0
  %764 = vmatpush.bf16.msra.mxu0 %v719
  %765 = vmatpush.bf16.msra.mxu0 %v718
  %766 = vmatpush.bf16.msra.mxu0 %v717
  %767 = vmatpush.bf16.msra.mxu0 %v716
  %768 = vmatmul.bf16.gmra.mxu0 %v755
  %v769 = vpop.f32.mrf.mxu0
  %v770 = vadd.f32 %v727, %v769
  %v771 = vpop.f32.mrf.mxu0
  %v772 = vadd.f32 %v732, %v771
  %773 = vmatmul.bf16.gmra.mxu0 %v758
  %v774 = vpop.f32.mrf.mxu0
  %v775 = vadd.f32 %v737, %v774
  %v776 = vpop.f32.mrf.mxu0
  %v777 = vadd.f32 %v742, %v776
  %778 = vdwg.mxu0
  %vm779 = vcmp.gt.f32.partialorder %v770, 0.0
  %vm780 = vcmp.gt.f32.partialorder %v772, 0.0
  %vm781 = vcmp.gt.f32.partialorder %v775, 0.0
  %vm782 = vcmp.gt.f32.partialorder %v777, 0.0
  %v783 = vmul.f32 %v770, 0.01
  %v784 = vmul.f32 %v772, 0.01
  %v785 = vmul.f32 %v775, 0.01
  %v786 = vmul.f32 %v777, 0.01
  %v787 = vsel %vm779, %v770, %v783
  %v788 = vsel %vm780, %v772, %v784
  %v789 = vsel %vm781, %v775, %v785
  %v790 = vsel %vm782, %v777, %v786
  %v791 = vadd.f32 %v565, %v787
  %v792 = vadd.f32 %v566, %v788
  %v793 = vadd.f32 %v567, %v789
  %v794 = vadd.f32 %v568, %v790
  %v795 = vld [vmem:[%s14] sm:$0xf]
  %v796 = vld [vmem:[%s14 + $0x4] sm:$0xf]
  %v797 = vld [vmem:[%s14 + $0x8] sm:$0xf]
  %v798 = vld [vmem:[%s14 + $0xc] sm:$0xf]
  %v799 = vld [vmem:[%s14 + $0x10] sm:$0xf]
  %v800 = vld [vmem:[%s14 + $0x14] sm:$0xf]
  %v801 = vld [vmem:[%s14 + $0x18] sm:$0xf]
  %v802 = vld [vmem:[%s14 + $0x1c] sm:$0xf]
  %v803 = vpack.c.bf16 %v792, %v791
  %v804 = vpack.c.bf16 %v794, %v793
  %v805 = vld [vmem:[%s15] sm:$0xff]
  %v806 = vld [vmem:[%s15 + $0x8] sm:$0xff]
  %v807 = vld [vmem:[%s15 + $0x10] sm:$0xff]
  %v808 = vld [vmem:[%s15 + $0x18] sm:$0xff]
  %v809 = vld [vmem:[%s15 + $0x20] sm:$0xff]
  %v810 = vld [vmem:[%s15 + $0x28] sm:$0xff]
  %v811 = vld [vmem:[%s15 + $0x30] sm:$0xff]
  %v812 = vld [vmem:[%s15 + $0x38] sm:$0xff]
  %814 = vset.pattern.permute.xlu0 0
  %815 = vperm.xlu0 %814, %v805
  %v816 = vpop.permute.xlu0 %815
  %819 = vset.pattern.permute.xlu0 0
  %820 = vperm.xlu0 %819, %v806
  %v821 = vpop.permute.xlu0 %820
  %824 = vset.pattern.permute.xlu0 0
  %825 = vperm.xlu0 %824, %v807
  %v826 = vpop.permute.xlu0 %825
  %829 = vset.pattern.permute.xlu0 0
  %830 = vperm.xlu0 %829, %v808
  %v831 = vpop.permute.xlu0 %830
  %834 = vset.pattern.permute.xlu0 0
  %835 = vperm.xlu0 %834, %v809
  %v836 = vpop.permute.xlu0 %835
  %839 = vset.pattern.permute.xlu0 0
  %840 = vperm.xlu0 %839, %v810
  %v841 = vpop.permute.xlu0 %840
  %844 = vset.pattern.permute.xlu0 0
  %845 = vperm.xlu0 %844, %v811
  %v846 = vpop.permute.xlu0 %845
  %849 = vset.pattern.permute.xlu0 0
  %850 = vperm.xlu0 %849, %v812
  %v851 = vpop.permute.xlu0 %850
  %v861 = vunpack.c.l.b16 %v795
  %v862 = vunpack.c.l.b16 %v796
  %v863 = vunpack.c.l.b16 %v797
  %v864 = vunpack.c.l.b16 %v798
  %v865 = vunpack.c.l.b16 %v799
  %v866 = vunpack.c.l.b16 %v800
  %v867 = vunpack.c.l.b16 %v801
  %v868 = vunpack.c.l.b16 %v802
  %v869 = vpack.c.b16 %v862, %v861
  %v870 = vpack.c.b16 %v864, %v863
  %v871 = vpack.c.b16 %v866, %v865
  %v872 = vpack.c.b16 %v868, %v867
  %v874 = vsel %vm71, %v869, 0
  %v877 = vsel %vm71, %v870, 0
  %v880 = vsel %vm71, %v871, 0
  %v883 = vsel %vm71, %v872, 0
  %885 = vmatpush.bf16.msra.mxu0 0
  %886 = vmatpush.bf16.msra.mxu0 0
  %887 = vmatpush.bf16.msra.mxu0 0
  %888 = vmatpush.bf16.msra.mxu0 0
  %889 = vmatpush.bf16.msra.mxu0 0
  %890 = vmatpush.bf16.msra.mxu0 0
  %891 = vmatpush.bf16.msra.mxu0 %v804
  %892 = vmatpush.bf16.msra.mxu0 %v803
  %893 = vmatmul.bf16.gmra.mxu0 %v874
  %v894 = vpop.f32.mrf.mxu0
  %v895 = vadd.f32 %v816, %v894
  %v896 = vpop.f32.mrf.mxu0
  %v897 = vadd.f32 %v821, %v896
  %898 = vmatmul.bf16.gmra.mxu0 %v877
  %v899 = vpop.f32.mrf.mxu0
  %v900 = vadd.f32 %v826, %v899
  %v901 = vpop.f32.mrf.mxu0
  %v902 = vadd.f32 %v831, %v901
  %903 = vmatmul.bf16.gmra.mxu0 %v880
  %v904 = vpop.f32.mrf.mxu0
  %v905 = vadd.f32 %v836, %v904
  %v906 = vpop.f32.mrf.mxu0
  %v907 = vadd.f32 %v841, %v906
  %908 = vmatmul.bf16.gmra.mxu0 %v883
  %v909 = vpop.f32.mrf.mxu0
  %v910 = vadd.f32 %v846, %v909
  %v911 = vpop.f32.mrf.mxu0
  %v912 = vadd.f32 %v851, %v911
  %913 = vdwg.mxu0
  %vm914 = vcmp.gt.f32.partialorder %v895, 0.0
  %vm915 = vcmp.gt.f32.partialorder %v897, 0.0
  %vm916 = vcmp.gt.f32.partialorder %v900, 0.0
  %vm917 = vcmp.gt.f32.partialorder %v902, 0.0
  %vm918 = vcmp.gt.f32.partialorder %v905, 0.0
  %vm919 = vcmp.gt.f32.partialorder %v907, 0.0
  %vm920 = vcmp.gt.f32.partialorder %v910, 0.0
  %vm921 = vcmp.gt.f32.partialorder %v912, 0.0
  %v922 = vmul.f32 %v895, 0.01
  %v923 = vmul.f32 %v897, 0.01
  %v924 = vmul.f32 %v900, 0.01
  %v925 = vmul.f32 %v902, 0.01
  %v926 = vmul.f32 %v905, 0.01
  %v927 = vmul.f32 %v907, 0.01
  %v928 = vmul.f32 %v910, 0.01
  %v929 = vmul.f32 %v912, 0.01
  %v930 = vsel %vm914, %v895, %v922
  %v931 = vsel %vm915, %v897, %v923
  %v932 = vsel %vm916, %v900, %v924
  %v933 = vsel %vm917, %v902, %v925
  %v934 = vsel %vm918, %v905, %v926
  %v935 = vsel %vm919, %v907, %v927
  %v936 = vsel %vm920, %v910, %v928
  %v937 = vsel %vm921, %v912, %v929
  %v938 = vld [vmem:[%s16] sm:$0xf]
  %v939 = vld [vmem:[%s16 + $0x4] sm:$0xf]
  %v940 = vld [vmem:[%s16 + $0x8] sm:$0xf]
  %v941 = vld [vmem:[%s16 + $0xc] sm:$0xf]
  %v942 = vpack.c.bf16 %v931, %v930
  %v943 = vpack.c.bf16 %v933, %v932
  %v944 = vpack.c.bf16 %v935, %v934
  %v945 = vpack.c.bf16 %v937, %v936
  %v946 = vld [vmem:[%s17] sm:$0xff]
  %v947 = vld [vmem:[%s17 + $0x8] sm:$0xff]
  %v948 = vld [vmem:[%s17 + $0x10] sm:$0xff]
  %v949 = vld [vmem:[%s17 + $0x18] sm:$0xff]
  %951 = vset.pattern.permute.xlu0 0
  %952 = vperm.xlu0 %951, %v946
  %v953 = vpop.permute.xlu0 %952
  %956 = vset.pattern.permute.xlu0 0
  %957 = vperm.xlu0 %956, %v947
  %v958 = vpop.permute.xlu0 %957
  %961 = vset.pattern.permute.xlu0 0
  %962 = vperm.xlu0 %961, %v948
  %v963 = vpop.permute.xlu0 %962
  %966 = vset.pattern.permute.xlu0 0
  %967 = vperm.xlu0 %966, %v949
  %v968 = vpop.permute.xlu0 %967
  %v974 = vunpack.c.l.b16 %v938
  %v975 = vunpack.c.l.b16 %v939
  %v976 = vunpack.c.l.b16 %v940
  %v977 = vunpack.c.l.b16 %v941
  %v978 = vpack.c.b16 %v975, %v974
  %v979 = vpack.c.b16 %v977, %v976
  %v981 = vsel %vm301, %v978, 0
  %v984 = vsel %vm301, %v979, 0
  %986 = vmatpush.bf16.msra.mxu0 0
  %987 = vmatpush.bf16.msra.mxu0 0
  %988 = vmatpush.bf16.msra.mxu0 0
  %989 = vmatpush.bf16.msra.mxu0 0
  %990 = vmatpush.bf16.msra.mxu0 %v945
  %991 = vmatpush.bf16.msra.mxu0 %v944
  %992 = vmatpush.bf16.msra.mxu0 %v943
  %993 = vmatpush.bf16.msra.mxu0 %v942
  %994 = vmatmul.bf16.gmra.mxu0 %v981
  %v995 = vpop.f32.mrf.mxu0
  %v996 = vadd.f32 %v953, %v995
  %v997 = vpop.f32.mrf.mxu0
  %v998 = vadd.f32 %v958, %v997
  %999 = vmatmul.bf16.gmra.mxu0 %v984
  %v1000 = vpop.f32.mrf.mxu0
  %v1001 = vadd.f32 %v963, %v1000
  %v1002 = vpop.f32.mrf.mxu0
  %v1003 = vadd.f32 %v968, %v1002
  %1004 = vdwg.mxu0
  %vm1005 = vcmp.gt.f32.partialorder %v996, 0.0
  %vm1006 = vcmp.gt.f32.partialorder %v998, 0.0
  %vm1007 = vcmp.gt.f32.partialorder %v1001, 0.0
  %vm1008 = vcmp.gt.f32.partialorder %v1003, 0.0
  %v1009 = vmul.f32 %v996, 0.01
  %v1010 = vmul.f32 %v998, 0.01
  %v1011 = vmul.f32 %v1001, 0.01
  %v1012 = vmul.f32 %v1003, 0.01
  %v1013 = vsel %vm1005, %v996, %v1009
  %v1014 = vsel %vm1006, %v998, %v1010
  %v1015 = vsel %vm1007, %v1001, %v1011
  %v1016 = vsel %vm1008, %v1003, %v1012
  %v1017 = vadd.f32 %v791, %v1013
  %v1018 = vadd.f32 %v792, %v1014
  %v1019 = vadd.f32 %v793, %v1015
  %v1020 = vadd.f32 %v794, %v1016
  %v1021 = vld [vmem:[%s18] sm:$0xf]
  %v1022 = vld [vmem:[%s18 + $0x4] sm:$0xf]
  %v1023 = vpack.c.bf16 %v1018, %v1017
  %v1024 = vpack.c.bf16 %v1020, %v1019
  %v1025 = vld [vmem:[%s19] sm:$0xff]
  %v1026 = vld [vmem:[%s19 + $0x8] sm:$0xff]
  %1028 = vset.pattern.permute.xlu0 0
  %1029 = vperm.xlu0 %1028, %v1025
  %v1030 = vpop.permute.xlu0 %1029
  %1033 = vset.pattern.permute.xlu0 0
  %1034 = vperm.xlu0 %1033, %v1026
  %v1035 = vpop.permute.xlu0 %1034
  %v1039 = vunpack.c.l.b16 %v1021
  %v1040 = vunpack.c.l.b16 %v1022
  %v1041 = vpack.c.b16 %v1040, %v1039
  %v1043 = vsel %vm71, %v1041, 0
  %1045 = vmatpush.bf16.msra.mxu0 0
  %1046 = vmatpush.bf16.msra.mxu0 0
  %1047 = vmatpush.bf16.msra.mxu0 0
  %1048 = vmatpush.bf16.msra.mxu0 0
  %1049 = vmatpush.bf16.msra.mxu0 0
  %1050 = vmatpush.bf16.msra.mxu0 0
  %1051 = vmatpush.bf16.msra.mxu0 %v1024
  %1052 = vmatpush.bf16.msra.mxu0 %v1023
  %1053 = vmatmul.bf16.gmra.mxu0 %v1043
  %v1054 = vpop.f32.mrf.mxu0
  %v1055 = vadd.f32 %v1030, %v1054
  %v1056 = vpop.f32.mrf.mxu0
  %v1057 = vadd.f32 %v1035, %v1056
  %1058 = vdwg.mxu0
  %vm1059 = vcmask 64512
  %1060 = vst.msk [vmem:[%s20] sm:$0xff] %vm1059, %v1055
  %1061 = vst.msk [vmem:[%s20 + $0x8] sm:$0xff] %vm1059, %v1057
  // Predicated region
  $region82: #{tpu_custom_call.1} parent=0 // pred_check
    _
  $region83: #{tpu_custom_call.1} parent=0 // pred_check_branch
    %1063 = sbr.rel (0) target = $region85
  $region84: #{tpu_custom_call.1} parent=0 // pred_region
    _
  $region85: #{tpu_custom_call.1} parent=0 // pred_fallthru
    _
  // Predicated region
  $region86: #{tpu_custom_call.1} parent=0 // pred_check
    _
  $region87: #{tpu_custom_call.1} parent=0 // pred_check_branch
    %1065 = sbr.rel (0) target = $region89
  $region88: #{tpu_custom_call.1} parent=0 // pred_region
    _
  $region89: #{tpu_custom_call.1} parent=0 // pred_fallthru
    _

</llo_original>
